<compile_context>
chip_gen: v6e
topology: v6e:2x2x1
jax: 0.10.0
libtpu: 0.0.40
codegen_flags: <defaults>
</compile_context>

<pallas_src>
import functools

import jax
import jax.numpy as jnp
from jax.experimental import pallas as pl
from jax.experimental.pallas import tpu as pltpu


def _cdiv(a, b):
    return -(-a // b)


def _round_up(n, m):
    return _cdiv(n, m) * m


def _ce_kernel(x_ref, w_ref, b_ref, y_ref, loss_ref, part_ref, *,
               true_b, tile_b, needs_mask):
    """One batch tile of Linear + CrossEntropyLoss(mean).

    x: (tile_b, H)      w: (H, H) resident (already W^T, already matmul dtype)
    b: (1, H) f32       y: (tile_b, 1) i32
    loss_ref: (1, 1) f32 SMEM output
    part_ref: (grid,) f32 SMEM scratch -- one partial-sum slot per grid step.
    """
    i = pl.program_id(0)
    n = pl.num_programs(0)

    # Linear layer on the MXU (f32 accumulation) + bias.  The weight already
    # carries the matmul dtype (cast hoisted to setup); only the streamed x
    # tile is cast here.
    w = w_ref[...]
    x = x_ref[...].astype(w.dtype)
    logits = jnp.dot(x, w, preferred_element_type=jnp.float32) + b_ref[...]

    # Numerically-stable log-softmax pieces (matches torch CrossEntropyLoss).
    m = jnp.max(logits, axis=-1, keepdims=True)                       # (tb, 1)
    shifted = logits - m                                              # (tb, H)
    lse = jnp.log(jnp.sum(jnp.exp(shifted), axis=-1, keepdims=True))  # (tb, 1)

    # Gather target class from the *shifted* logits via one-hot select
    # (no dynamic gather on TPU).  loss = lse(shifted) - shifted[target].
    y = y_ref[...]                                                    # (tb, 1)
    cls_idx = jax.lax.broadcasted_iota(jnp.int32, shifted.shape, 1)   # (tb, H)
    target_shifted = jnp.sum(jnp.where(cls_idx == y, shifted, 0.0),
                             axis=-1, keepdims=True)                  # (tb, 1)
    losses = lse - target_shifted                                     # (tb, 1)

    # Per-tile partial sum into its own SMEM slot: no loop-carried
    # load-add-store chain in the hot loop.
    if needs_mask:
        # Only the ragged last tile has rows past the true batch size, and only
        # it pays the iota/compare mask.  Ragged rows may hold garbage
        # (inf/nan), so where-select, never multiply-mask.
        @pl.when(i == n - 1)
        def _masked():
            row = jax.lax.broadcasted_iota(jnp.int32, losses.shape, 0) + i * tile_b
            part_ref[i] = jnp.sum(jnp.where(row < true_b, losses, 0.0))

        @pl.when(i < n - 1)
        def _unmasked():
            part_ref[i] = jnp.sum(losses)
    else:
        part_ref[i] = jnp.sum(losses)

    @pl.when(i == n - 1)
    def _finalize():
        total = jax.lax.fori_loop(0, n, lambda k, s: s + part_ref[k],
                                  jnp.float32(0.0))
        # Mean over the *true* batch size (default CrossEntropyLoss reduction).
        loss_ref[0, 0] = total / jnp.float32(true_b)


def simple_model_loss(x, weight_t, bias, y, *, curriculum_seqlen=None,
                      block_b=None):
    """Curriculum_SimpleModel.forward.

    x:        (B, H) f32 activations.
    weight_t: (H_in, H_out) -- nn.Linear weight, ALREADY transposed and ALREADY
              in the desired matmul dtype (bf16 recommended), both hoisted to
              setup time so nothing is re-cast per call / per grid step.
    bias:     (H,) f32.
    y:        (B,) integer class labels.
    Returns (loss, curriculum_seqlen), matching the PyTorch module.
    """
    B, H = x.shape
    assert weight_t.shape == (H, H) and bias.shape == (H,)

    # Fat, balanced batch tiles (fewer grid steps, bigger DMAs); never pad x/y
    # in HBM -- a ragged last tile is masked in-kernel instead.
    target = 1024 if block_b is None else block_b
    target = max(8, min(target, _round_up(B, 8)))
    n_tiles = _cdiv(B, target)
    block_b = _round_up(_cdiv(B, n_tiles), 8)   # multiple of 8 sublanes
    grid_b = _cdiv(B, block_b)
    needs_mask = (grid_b * block_b) != B

    y2d = y.astype(jnp.int32).reshape(B, 1)
    b2d = bias.astype(jnp.float32).reshape(1, H)

    kernel = functools.partial(_ce_kernel, true_b=B, tile_b=block_b,
                               needs_mask=needs_mask)

    out = pl.pallas_call(
        kernel,
        out_shape=jax.ShapeDtypeStruct((1, 1), jnp.float32),
        grid=(grid_b,),
        in_specs=[
            pl.BlockSpec((block_b, H), lambda i: (i, 0)),  # x: streamed tiles
            pl.BlockSpec((H, H), lambda i: (0, 0)),        # W^T: resident
            pl.BlockSpec((1, H), lambda i: (0, 0)),        # bias: resident
            pl.BlockSpec((block_b, 1), lambda i: (i, 0)),  # labels: streamed
        ],
        # Scalar loss lives in SMEM (no padded VMEM tile / masked-store epilogue).
        out_specs=pl.BlockSpec(memory_space=pltpu.MemorySpace.SMEM),
        scratch_shapes=[pltpu.SMEM((grid_b,), jnp.float32)],  # per-tile partials
        compiler_params=pltpu.CompilerParams(
            dimension_semantics=("arbitrary",)),
    )(x, weight_t, b2d, y2d)

    return out[0, 0], curriculum_seqlen


if __name__ == "__main__":
    hidden_dim = 32

    key = jax.random.PRNGKey(0)
    kx, kw, kb, ky = jax.random.split(key, 4)

    # Deterministic init mimicking torch.nn.Linear's U(-1/sqrt(H), 1/sqrt(H)).
    bound = 1.0 / jnp.sqrt(jnp.float32(hidden_dim))
    weight = jax.random.uniform(kw, (hidden_dim, hidden_dim), jnp.float32, -bound, bound)
    bias = jax.random.uniform(kb, (hidden_dim,), jnp.float32, -bound, bound)
    # Setup-time hoists: transpose once, cast to the matmul dtype once.
    weight_t_f32 = weight.T
    weight_t_bf16 = weight_t_f32.astype(jnp.bfloat16)

    def reference_loss(x, y, w_t):
        xm = x.astype(w_t.dtype)
        logits = jnp.dot(xm, w_t, preferred_element_type=jnp.float32) + bias
        logp = jax.nn.log_softmax(logits, axis=-1)
        return -jnp.mean(logp[jnp.arange(x.shape[0]), y])

    # batch=8: single tile; batch=24: 3 tiles (block_b=8); batch=21: ragged,
    # masked last tile; batch=2000/1999: fat default tiles, balanced / ragged.
    cases = [(8, 8), (21, 8), (24, 8), (21, None), (2000, None), (1999, None)]
    for batch, blk in cases:
        kxb, kyb = jax.random.split(jax.random.fold_in(kx, batch))
        x = jax.random.normal(kxb, (batch, hidden_dim), jnp.float32)
        y = jax.random.randint(kyb, (batch,), 0, hidden_dim, dtype=jnp.int32)

        ref_bf16 = reference_loss(x, y, weight_t_bf16)
        ref_f32 = reference_loss(x, y, weight_t_f32)

        # bf16-weight MXU path (recommended): tight vs. same-precision
        # reference, loose vs. full-f32 reference.
        loss, seqlen = simple_model_loss(x, weight_t_bf16, bias, y,
                                         curriculum_seqlen=batch, block_b=blk)
        loss = jax.block_until_ready(loss)
        assert jnp.allclose(loss, ref_bf16, rtol=1e-3, atol=1e-3), (batch, loss, ref_bf16)
        assert jnp.allclose(loss, ref_f32, rtol=5e-2, atol=5e-2), (batch, loss, ref_f32)
        assert seqlen == batch

        # Exact-f32 path: tight vs. full-f32 reference.
        loss32, _ = simple_model_loss(x, weight_t_f32, bias, y,
                                      curriculum_seqlen=batch, block_b=blk)
        loss32 = jax.block_until_ready(loss32)
        assert jnp.allclose(loss32, ref_f32, rtol=1e-5, atol=1e-5), (batch, loss32, ref_f32)

    print("KERNEL_OK")
</pallas_src>

<mosaic_0001>
module attributes {stable_mosaic.version = 11 : i64} {
  func.func @_ce_kernel(%arg0: i32, %arg1: memref<8x32xf32, #tpu.memory_space<vmem>>, %arg2: memref<32x32xbf16, #tpu.memory_space<vmem>>, %arg3: memref<1x32xf32, #tpu.memory_space<vmem>>, %arg4: memref<8x1xi32, #tpu.memory_space<vmem>>, %arg5: memref<1x1xf32, #tpu.memory_space<smem>>, %arg6: memref<1xf32, #tpu.memory_space<smem>>) attributes {dimension_semantics = [#tpu.dimension_semantics<arbitrary>], iteration_bounds = array<i64: 1>, scalar_prefetch = 0 : i64, scratch_operands = 1 : i64, tpu.core_type = #tpu.core_type<tc>, window_params = [{transform_indices = @transform_0, window_bounds = array<i64: 8, 32>}, {pipeline_mode = #tpu.pipeline_mode<synchronous>, transform_indices = @transform_1, window_bounds = array<i64: 32, 32>}, {pipeline_mode = #tpu.pipeline_mode<synchronous>, transform_indices = @transform_2, window_bounds = array<i64: 1, 32>}, {transform_indices = @transform_3, window_bounds = array<i64: 8, 1>}, {transform_indices = @transform_4, window_bounds = array<i64: 1, 1>}]} {
    %c0 = arith.constant 0 : index
    %c0_0 = arith.constant 0 : index
    %0 = vector.load %arg2[%c0, %c0_0] : memref<32x32xbf16, #tpu.memory_space<vmem>>, vector<32x32xbf16>
    %c0_1 = arith.constant 0 : index
    %c0_2 = arith.constant 0 : index
    %1 = vector.load %arg1[%c0_1, %c0_2] : memref<8x32xf32, #tpu.memory_space<vmem>>, vector<8x32xf32>
    %2 = arith.truncf %1 : vector<8x32xf32> to vector<8x32xbf16>
    %cst = arith.constant dense<0.000000e+00> : vector<8x32xf32>
    %3 = tpu.matmul %2, %0, %cst {dimension_numbers = #tpu.dot_dimension_numbers<[1], [0], [0], [1], [0, 0, 1, 1], [], []>} : vector<8x32xbf16>, vector<32x32xbf16>, vector<8x32xf32> -> vector<8x32xf32>
    %c0_3 = arith.constant 0 : index
    %c0_4 = arith.constant 0 : index
    %4 = vector.load %arg3[%c0_3, %c0_4] : memref<1x32xf32, #tpu.memory_space<vmem>>, vector<1x32xf32>
    %5 = vector.broadcast %4 : vector<1x32xf32> to vector<8x32xf32>
    %6 = arith.addf %3, %5 : vector<8x32xf32>
    %cst_5 = arith.constant dense<0xFF800000> : vector<8xf32>
    %7 = vector.multi_reduction <maximumf>, %6, %cst_5 [1] : vector<8x32xf32> to vector<8xf32>
    %8 = vector.shape_cast %7 : vector<8xf32> to vector<8x1xf32>
    %9 = vector.broadcast %8 : vector<8x1xf32> to vector<8x32xf32>
    %10 = arith.subf %6, %9 : vector<8x32xf32>
    %11 = math.exp %10 : vector<8x32xf32>
    %cst_6 = arith.constant dense<0.000000e+00> : vector<8xf32>
    %12 = vector.multi_reduction <add>, %11, %cst_6 [1] : vector<8x32xf32> to vector<8xf32>
    %13 = vector.shape_cast %12 : vector<8xf32> to vector<8x1xf32>
    %14 = math.log %13 : vector<8x1xf32>
    %c0_7 = arith.constant 0 : index
    %c0_8 = arith.constant 0 : index
    %15 = vector.load %arg4[%c0_7, %c0_8] : memref<8x1xi32, #tpu.memory_space<vmem>>, vector<8x1xi32>
    %16 = tpu.iota {dimensions = array<i32: 1>} : vector<8x32xi32>
    %17 = vector.broadcast %15 : vector<8x1xi32> to vector<8x32xi32>
    %18 = arith.cmpi eq, %16, %17 : vector<8x32xi32>
    %cst_9 = arith.constant 0.000000e+00 : f32
    %19 = vector.broadcast %cst_9 : f32 to vector<8x32xf32>
    %20 = arith.select %18, %10, %19 : vector<8x32xi1>, vector<8x32xf32>
    %cst_10 = arith.constant dense<0.000000e+00> : vector<8xf32>
    %21 = vector.multi_reduction <add>, %20, %cst_10 [1] : vector<8x32xf32> to vector<8xf32>
    %22 = vector.shape_cast %21 : vector<8xf32> to vector<8x1xf32>
    %23 = arith.subf %14, %22 : vector<8x1xf32>
    %24 = vector.shape_cast %23 : vector<8x1xf32> to vector<1x8x1xf32>
    %cst_11 = arith.constant dense<0.000000e+00> : vector<1xf32>
    %25 = vector.multi_reduction <add>, %24, %cst_11 [1, 2] : vector<1x8x1xf32> to vector<1xf32>
    %26 = vector.shape_cast %25 : vector<1xf32> to vector<1x1x1xf32>
    %27 = vector.extract %26[0, 0, 0] : f32 from vector<1x1x1xf32>
    %28 = arith.index_cast %arg0 : i32 to index
    %29 = memref.load %arg6[%28] : memref<1xf32, #tpu.memory_space<smem>>
    memref.store %27, %arg6[%28] : memref<1xf32, #tpu.memory_space<smem>>
    %c0_i32 = arith.constant 0 : i32
    %30 = arith.cmpi eq, %arg0, %c0_i32 : i32
    %31 = arith.extui %30 : i1 to i32
    %c0_i32_12 = arith.constant 0 : i32
    %32 = arith.cmpi ne, %31, %c0_i32_12 : i32
    scf.if %32 {
      %cst_13 = arith.constant 0.000000e+00 : f32
      %c0_i32_14 = arith.constant 0 : i32
      %33 = arith.index_cast %c0_i32_14 : i32 to index
      %34 = memref.load %arg6[%33] : memref<1xf32, #tpu.memory_space<smem>>
      %35 = arith.addf %cst_13, %34 : f32
      %c1_i32 = arith.constant 1 : i32
      %cst_15 = arith.constant 8.000000e+00 : f32
      %36 = arith.divf %35, %cst_15 : f32
      %c0_16 = arith.constant 0 : index
      %c0_17 = arith.constant 0 : index
      %37 = memref.load %arg5[%c0_16, %c0_17] : memref<1x1xf32, #tpu.memory_space<smem>>
      memref.store %36, %arg5[%c0_16, %c0_17] : memref<1x1xf32, #tpu.memory_space<smem>>
    } else {
    }
    return
  }
  func.func @transform_0(%arg0: i32) -> (i32, i32) {
    %c0_i32 = arith.constant 0 : i32
    %c0_i32_0 = arith.constant 0 : i32
    return %arg0, %c0_i32 : i32, i32
  }
  func.func @transform_1(%arg0: i32) -> (i32, i32) {
    %c0_i32 = arith.constant 0 : i32
    %c0_i32_0 = arith.constant 0 : i32
    %c0_i32_1 = arith.constant 0 : i32
    return %c0_i32, %c0_i32_0 : i32, i32
  }
  func.func @transform_2(%arg0: i32) -> (i32, i32) {
    %c0_i32 = arith.constant 0 : i32
    %c0_i32_0 = arith.constant 0 : i32
    %c0_i32_1 = arith.constant 0 : i32
    return %c0_i32, %c0_i32_0 : i32, i32
  }
  func.func @transform_3(%arg0: i32) -> (i32, i32) {
    %c0_i32 = arith.constant 0 : i32
    %c0_i32_0 = arith.constant 0 : i32
    return %arg0, %c0_i32 : i32, i32
  }
  func.func @transform_4(%arg0: i32) -> (i32, i32) {
    %c0_i32 = arith.constant 0 : i32
    %c0_i32_0 = arith.constant 0 : i32
    %c0_i32_1 = arith.constant 0 : i32
    return %c0_i32, %c0_i32_0 : i32, i32
  }
}

</mosaic_0001>

<llo_original>
// kernel: tpu_custom_call.1
$region0: #{tpu_custom_call.1}
  #allocation0 [shape = 'u32[]', space=smem, size = 0x4, offset = 0x4, fixed_abs, tag = 'smem constant byte address 0x4 - core index']
  #allocation1 [shape = 'u32[144,128]{1,0:T(1,128)}', space=vmem, size = 0x12000, scoped, tag = 'internal scratch']
  #allocation2 [shape = 'f32[1]{0:T(128)}', space=smem, size = 0x200, scoped, tag = 'scratch operand']
  %s0 = inlined_call_operand.vmem [shape: f32[8,32], index: 0, kind: input, shape index: {}]
  %s1 = inlined_call_operand.hbm [shape: bf16[32,32], index: 1, kind: input, shape index: {}]
  %s2 = inlined_call_operand.vmem [shape: f32[1,32], index: 2, kind: input, shape index: {}]
  %s3 = inlined_call_operand.vmem [shape: s32[8,1], index: 3, kind: input, shape index: {}]
  %s4 = inlined_call_operand.hbm [shape: f32[1,1], index: 4, kind: output, shape index: {}]
  %s5 = sld [smem:[#allocation0]]
  $region34: #{tpu_custom_call.1} parent=0
    _
  %s7 = ssub.s32 1, %s5
  %s8 = scalar_select 0, %s7, %s5
  $region1: #{tpu_custom_call.1} parent=0
    #allocation3 [shape = 'u8[8192]{0}', space=vmem, size = 0x2000, scoped, tag = 'input window, operand 1, single buffered']
    #allocation4 [shape = 's32[1]{0}', space=sflag, size = 0x4, scoped, tag = 'scoped memory for tpu_custom_call.1']
    #allocation5 [shape = 's32[1]{0}', space=sflag, size = 0x4, scoped, tag = 'scoped memory for tpu_custom_call.1']
    #allocation6 [shape = 'u8[512]{0}', space=smem, size = 0x200, scoped, tag = 'output window, operand 0, single buffered']
    %9 = vsyncpa [#allocation4], 0
    %10 = vsyncpa [#allocation5], 0
    // Predicated region
    $region2: #{tpu_custom_call.1} parent=1 // pred_check
      _
    $region3: #{tpu_custom_call.1} parent=1 // pred_check_branch
      %12 = sbr.rel (0) target = $region5
    $region4: #{tpu_custom_call.1} parent=1 // pred_region
      _
    $region5: #{tpu_custom_call.1} parent=1 // pred_fallthru
      _
    // Predicated region
    $region6: #{tpu_custom_call.1} parent=1 // pred_check
      _
    $region7: #{tpu_custom_call.1} parent=1 // pred_check_branch
      %14 = sbr.rel (0) target = $region9
    $region8: #{tpu_custom_call.1} parent=1 // pred_region
      %s16 = ssub.s32 256, 256
      %17 = vsyncadd [#allocation4], %s16
      %s18 = sshll.u32 [#allocation3], 4
      %s19 = int_to_ptr.vmem [resolvable:$true] %s18
      %24 = dma.hbm_to_vmem [thread:$0]  %s1, 256, %s19, [#allocation4], 64, 64, 4
    $region9: #{tpu_custom_call.1} parent=1 // pred_fallthru
      _
    // Predicated region
    $region10: #{tpu_custom_call.1} parent=1 // pred_check
      _
    $region11: #{tpu_custom_call.1} parent=1 // pred_check_branch
      %26 = sbr.rel (0) target = $region13
    $region12: #{tpu_custom_call.1} parent=1 // pred_region
      _
    $region13: #{tpu_custom_call.1} parent=1 // pred_fallthru
      _
    // Predicated region
    $region14: #{tpu_custom_call.1} parent=1 // pred_check
      _
    $region15: #{tpu_custom_call.1} parent=1 // pred_check_branch
      %28 = sbr.rel (0) target = $region17
    $region16: #{tpu_custom_call.1} parent=1 // pred_region
      _
    $region17: #{tpu_custom_call.1} parent=1 // pred_fallthru
      _
    // Predicated region
    $region18: #{tpu_custom_call.1} parent=1 // pred_check
      _
    $region19: #{tpu_custom_call.1} parent=1 // pred_check_branch
      %30 = sbr.rel (0) target = $region21
    $region20: #{tpu_custom_call.1} parent=1 // pred_region
      %31 = dma.done [#allocation4], 256
    $region21: #{tpu_custom_call.1} parent=1 // pred_fallthru
      _
    %v33 = vld [vmem:[#allocation3] sm:$0xf]
    %v34 = vld [vmem:[#allocation3 + $0x4] sm:$0xf]
    %v35 = vld [vmem:[#allocation3 + $0x8] sm:$0xf]
    %v36 = vld [vmem:[#allocation3 + $0xc] sm:$0xf]
    %v37 = vld [vmem:[%s0] sm:$0xff]
    %v38 = vpack.c.bf16 %v37, %v37
    %v39 = vld [vmem:[%s2] sm:$0x1]
    %v41 = vlaneseq
    %v42 = vshrl.u32 %v41, 7
    %v43 = vsub.s32 0, %v42
    %v44 = vrot.slane %v39, %v43
    %v50 = vunpack.c.l.b16 %v33
    %v51 = vunpack.c.l.b16 %v34
    %v52 = vunpack.c.l.b16 %v35
    %v53 = vunpack.c.l.b16 %v36
    %v54 = vpack.c.b16 %v51, %v50
    %v55 = vpack.c.b16 %v53, %v52
    %vm58 = vcmask 261120
    %v60 = vsel %vm58, %v38, 0
    %62 = vmatprep.subr.bf16.mxu0 0
    %63 = vmatpush1.bf16.msra.mxu0 0
    %64 = vmatprep.subr.bf16.mxu0 0
    %65 = vmatpush1.bf16.msra.mxu0 0
    %66 = vmatprep.subr.bf16.mxu0 0
    %67 = vmatpush1.bf16.msra.mxu0 0
    %68 = vmatprep.subr.bf16.mxu0 0
    %69 = vmatpush1.bf16.msra.mxu0 0
    %70 = vmatprep.subr.bf16.mxu0 0
    %71 = vmatpush1.bf16.msra.mxu0 0
    %72 = vmatprep.subr.bf16.mxu0 0
    %73 = vmatpush1.bf16.msra.mxu0 0
    %74 = vmatprep.subr.bf16.mxu0 0
    %75 = vmatpush1.bf16.msra.mxu0 %v55
    %76 = vmatprep.subr.bf16.mxu0 0
    %77 = vmatpush1.bf16.msra.mxu0 %v54
    %78 = vmatprep.subr.bf16.mxu0 0
    %79 = vmatpush2.bf16.msra.mxu0 0
    %80 = vmatprep.subr.bf16.mxu0 0
    %81 = vmatpush2.bf16.msra.mxu0 0
    %82 = vmatprep.subr.bf16.mxu0 0
    %83 = vmatpush2.bf16.msra.mxu0 0
    %84 = vmatprep.subr.bf16.mxu0 0
    %85 = vmatpush2.bf16.msra.mxu0 0
    %86 = vmatprep.subr.bf16.mxu0 0
    %87 = vmatpush2.bf16.msra.mxu0 0
    %88 = vmatprep.subr.bf16.mxu0 0
    %89 = vmatpush2.bf16.msra.mxu0 0
    %90 = vmatprep.subr.bf16.mxu0 0
    %91 = vmatpush2.bf16.msra.mxu0 0
    %92 = vmatprep.subr.bf16.mxu0 0
    %93 = vmatpush2.bf16.msra.mxu0 0
    %94 = vmatprep.mubr.bf16.mxu0 0
    %95 = vmatmul.mubr.bf16.gmra.mxu0 %v60
    %v96 = vpop.f32.mrf.mxu0
    %v97 = vadd.f32 %v44, %v96
    %v98 = vpop.f32.mrf.mxu0
    %v99 = vpop.f32.mrf.mxu0
    %v100 = vpop.f32.mrf.mxu0
    %101 = vdwg.mxu0
    %v102 = vsel %vm58, %v97, -inf
    %103 = vmax.xlane.f32.xlu0 %v102
    %v104 = vpop.xlane.xlu0 %103
    %v105 = vsub.f32 %v97, %v104
    %v106 = vmul.f32 %v105, 1.442695
    %v107 = vpow.pop %v106
    %v108 = vsel %vm58, %v107, 0.0
    %109 = vadd.xlane.f32.xlu0 %v108
    %v110 = vpop.xlane.xlu0 %109
    %v111 = vlog2.pop %v110
    %v112 = vmul.f32 %v111, 0.6931472
    %v113 = vld [vmem:[%s3] sm:$0xff]
    %v114 = vlaneseq
    %v115 = vand.u32 %v114, 127
    %116 = vset.pattern.permute.xlu0 0
    %117 = vperm.xlu0 %116, %v113
    %v118 = vpop.permute.xlu0 %117
    %vm119 = vcmp.eq.s32.totalorder %v115, %v118
    %v120 = vsel %vm119, %v105, 0.0
    %v121 = vsel %vm58, %v120, 0.0
    %122 = vadd.xlane.f32.xlu0 %v121
    %v123 = vpop.xlane.xlu0 %122
    %v124 = vsub.f32 %v112, %v123
    %vm125 = vcmask 7168
    %v126 = vsel %vm125, %v124, 0.0
    %127 = vadd.xlane.f32.xlu0 %v126
    %v128 = vpop.xlane.xlu0 %127
    %v129 = vrot.slane %v128, 4
    %v130 = vadd.f32 %v128, %v129
    %v131 = vrot.slane %v130, 2
    %v132 = vadd.f32 %v130, %v131
    %v133 = vrot.slane %v132, 1
    %v134 = vadd.f32 %v132, %v133
    %s135 = vtos %v134
    %s136 = scalar_lea.smem [#allocation2], 0
    %137 = sst [smem:[%s136]] %s135
    %p138 = scmp.eq.s32.totalorder 0, 0
    // Predicated region
    $region22: #{tpu_custom_call.1} parent=1 // pred_check
      %p139 = pneg %p138
    $region23: #{tpu_custom_call.1} parent=1 // pred_check_branch
      %141 = sbr.rel (%p139) target = $region25
    $region24: #{tpu_custom_call.1} parent=1 // pred_region
      %s142 = sld [smem:[#allocation2]]
      %s143 = sadd.f32 %s142, 0.0
      %v144 = vrcp.pop 8.0
      %s145 = vtos %v144
      %s146 = smul.f32 %s143, %s145
      %s147 = scalar_lea.smem [#allocation6], 0
      %148 = sst [smem:[%s147]] %s146
    $region25: #{tpu_custom_call.1} parent=1 // pred_fallthru
      _
    // Predicated region
    $region26: #{tpu_custom_call.1} parent=1 // pred_check
      _
    $region27: #{tpu_custom_call.1} parent=1 // pred_check_branch
      %150 = sbr.rel (0) target = $region29
    $region28: #{tpu_custom_call.1} parent=1 // pred_region
      %s152 = ssub.s32 16, 16
      %153 = vsyncadd [#allocation5], %s152
      %156 = dma.smem_to_hbm [#allocation6], 16, %s4, [#allocation5]
    $region29: #{tpu_custom_call.1} parent=1 // pred_fallthru
      _
    // Predicated region
    $region30: #{tpu_custom_call.1} parent=1 // pred_check
      _
    $region31: #{tpu_custom_call.1} parent=1 // pred_check_branch
      %158 = sbr.rel (0) target = $region33
    $region32: #{tpu_custom_call.1} parent=1 // pred_region
      %159 = dma.done [#allocation5], 16
    $region33: #{tpu_custom_call.1} parent=1 // pred_fallthru
      _
    %160 = sfence
    %161 = vsyncpa [#allocation4], 1
    %162 = vsyncpa [#allocation5], 1

</llo_original>
